<compile_context>
chip_gen: v7x
topology: tpu7x:2x2x1
jax: 0.10.0
libtpu: 0.0.40
codegen_flags: <defaults>
</compile_context>

<pallas_src>
import functools

import numpy as np
import jax
import jax.numpy as jnp
from jax import lax
from jax.experimental import pallas as pl
from jax.experimental.pallas import tpu as pltpu


def _i32(v: int) -> int:
    """Reinterpret an unsigned 32-bit constant as a two's-complement int32."""
    v &= 0xFFFFFFFF
    return v - (1 << 32) if v >= (1 << 31) else v


# lowbias32 / splitmix-style mixing constants, expressed as int32 literals.
_MIX1 = _i32(0x7FEB352D)
_MIX2 = _i32(0x846CA68B)
_GOLD = _i32(0x9E3779B9)
_KEY2 = _i32(0x85EBCA6B)

_SUBLANES = 32            # uint8 sublane-tile height -> dense int8 stores
_LANE_QUANTUM = _SUBLANES * 128   # minimum / granularity of the per-tile batch (4096)


def _lsr(x, n: int):
    """Logical right shift on int32 (arithmetic shift + mask of the sign bits)."""
    return (x >> n) & ((1 << (32 - n)) - 1)


def _mix32(x):
    """lowbias32-style avalanche mix; bit-identical to the uint32 formulation."""
    x = x ^ _lsr(x, 16)
    x = x * _MIX1
    x = x ^ _lsr(x, 15)
    x = x * _MIX2
    x = x ^ _lsr(x, 16)
    return x


def _uniform_mask_kernel(seed_ref, out_ref, *, powers, val_mask, size_eff):
    """seed_ref: SMEM (1,) int32 (scalar prefetch); out_ref: VMEM (size, 32, tl) uint8.

    Layout: the batch is split as 32 sublanes x tl lanes per grid step, so the int32
    PRNG math runs on fully-occupied vregs and the uint8 stores are sublane-dense.
    """
    size, rows, tl = out_ref.shape          # rows == 32
    tb = rows * tl                          # samples per grid step
    pid = pl.program_id(0)

    # Global sample index of every (sublane, lane) element -> hash counter.
    row = lax.broadcasted_iota(jnp.int32, (rows, tl), 0)
    col = lax.broadcasted_iota(jnp.int32, (rows, tl), 1)
    gidx = pid * tb + row * tl + col

    # Counter-based PRNG, seed folded into the counter before a single full mix
    # per stream (2 mixes instead of 3; 1 mix when size_eff <= 16).
    seed = seed_ref[0]
    h1 = _mix32(gidx ^ (seed * _GOLD + 1))
    v1 = h1 & val_mask
    if size_eff <= 16:
        # Fallback draw from a disjoint bit-window of the same hash (bits
        # [size_eff, 2*size_eff) are independent of bits [0, size_eff)).
        v2 = _lsr(h1, size_eff) & val_mask
    else:
        h2 = _mix32(gidx ^ (seed * _GOLD + _KEY2))
        v2 = h2 & val_mask

    # integers ~ Uniform[1, 2**k - 1]  (== torch.randint(1, 2 * powers[-1])).
    ints = jnp.where(v1 != 0, v1, v2)       # second draw if the first is 0
    ints = jnp.where(ints != 0, ints, jnp.int32(1))   # residual bias ~2**-2k

    # bit_repr + filter scatter, unrolled at trace time.  `powers` are static
    # Python ints, so each row is a single immediate AND + compare + cast + store;
    # filtered-out rows store a constant zero slab.
    zeros = jnp.zeros((rows, tl), jnp.uint8)
    for j, p in enumerate(powers):
        if p:
            out_ref[j] = ((ints & jnp.int32(p)) != 0).astype(jnp.uint8)
        else:
            out_ref[j] = zeros


def make_uniform_mask(size: int, filtr: str = None, max_tile_lanes: int = 8192):
    """Build a mask sampler equivalent to UniformMask(size, filtr).forward."""
    assert max_tile_lanes >= _LANE_QUANTUM and max_tile_lanes % _LANE_QUANTUM == 0
    # VMEM guard: output buffering is buffers * size * tile_lanes bytes (uint8,
    # dense).  Keep it far below v7x's 64 MiB (32 MiB scoped default) even with
    # triple buffering and size == 31.
    assert 3 * max(size, 1) * max_tile_lanes <= 8 * 1024 * 1024, "tile too large for VMEM budget"

    if filtr is None:
        keep = [True] * size
    else:
        assert len(filtr) == size
        keep = [c == "1" for c in filtr]

    size_eff = sum(keep)
    assert 1 <= size_eff <= 31, "size_eff must be in [1, 31] for 32-bit sampling"

    # powers[j] = 2**rank(j) if position j is filtered-in else 0.
    powers, rank = [], 0
    for kp in keep:
        if kp:
            powers.append(1 << rank)
            rank += 1
        else:
            powers.append(0)
    val_mask = (1 << size_eff) - 1

    kernel = functools.partial(
        _uniform_mask_kernel,
        powers=tuple(powers),
        val_mask=val_mask,
        size_eff=size_eff,
    )

    def _round_up(n, m):
        return ((n + m - 1) // m) * m

    target_tiles = 8   # aim for >= ~8 grid steps (pipelining; >=2 for v7x megacore)

    def sample(shape, seed: int, *, as_bool: bool = True) -> jax.Array:
        if isinstance(shape, int):
            shape = (shape,)
        shape = tuple(int(s) for s in shape)
        batch = int(np.prod(shape, dtype=np.int64)) if shape else 1
        assert batch >= 1

        # Tile the batch: tb samples per grid step (multiple of 32*128 so the
        # kernel layout stays dense), sized so the grid has ~target_tiles steps
        # when the batch allows, capped at max_tile_lanes.
        tb = _round_up(-(-batch // target_tiles), _LANE_QUANTUM)
        tb = min(tb, max_tile_lanes)
        tl = tb // _SUBLANES
        batch_p = _round_up(batch, tb)
        grid_b = batch_p // tb

        seed_arr = jnp.asarray([seed], dtype=jnp.int32)
        raw = pl.pallas_call(
            kernel,
            out_shape=jax.ShapeDtypeStruct((grid_b, size, _SUBLANES, tl), jnp.uint8),
            grid_spec=pltpu.PrefetchScalarGridSpec(
                num_scalar_prefetch=1,        # seed lives in SMEM
                grid=(grid_b,),
                in_specs=[],                  # powers are baked in -> no tensor inputs
                # NOTE: if xprof ever shows the output writeback exposed, add
                # pipeline_mode=pl.Buffered(3) here (VMEM cost < 1 MiB).
                out_specs=pl.BlockSpec(
                    (None, size, _SUBLANES, tl), lambda i, _seed: (i, 0, 0, 0)
                ),
            ),
            compiler_params=pltpu.CompilerParams(
                dimension_semantics=("parallel",),   # megacore-shardable on v7x
            ),
        )(seed_arr)                           # (grid_b, size, 32, tl) uint8

        if not as_bool:
            # Zero extra passes for fusion-capable consumers.  Index mapping:
            # mask bit j of global sample n lives at
            #   raw[n // tb, j, (n % tb) // tl, n % tl].
            return raw

        # Module-faithful presentation: shape + (size,), bool.  Single XLA pass
        # (transpose + reshape + cast) over size*batch bytes.
        flat = raw.transpose(0, 2, 3, 1).reshape(grid_b * _SUBLANES * tl, size)
        flat = flat[:batch]
        return flat.reshape(shape + (size,)).astype(jnp.bool_)

    return sample, keep, size_eff


if __name__ == "__main__":
    key = jax.random.PRNGKey(0)
    seed = int(jax.random.randint(key, (), 0, 2**31 - 1))

    # --- filtered sampler (size=8, 5 bits kept), batch not a multiple of 128 ---
    size, filtr, batch = 8, "10110101", 200
    sampler, keep, k = make_uniform_mask(size, filtr)
    masks = jax.block_until_ready(sampler(batch, seed))
    assert masks.shape == (batch, size) and masks.dtype == jnp.bool_

    m = np.asarray(masks)
    ranks = np.cumsum(keep) - 1
    ints = np.zeros(batch, dtype=np.int64)
    for j, kp in enumerate(keep):
        if kp:
            ints += m[:, j].astype(np.int64) << int(ranks[j])
        else:
            assert not m[:, j].any(), f"filtered-out column {j} must be all False"
    assert ints.min() >= 1 and ints.max() <= (1 << k) - 1
    assert len(np.unique(ints)) > (1 << k) // 4        # crude PRNG sanity

    # Determinism + seed sensitivity.
    m2 = np.asarray(jax.block_until_ready(sampler(batch, seed)))
    assert np.array_equal(m, m2)
    m3 = np.asarray(jax.block_until_ready(sampler(batch, seed + 1)))
    assert not np.array_equal(m, m3)

    # --- unfiltered sampler, multi-tile grid (3 tiles of 4096 samples) ---------
    sampler2, keep2, k2 = make_uniform_mask(8, None, max_tile_lanes=4096)
    batch2 = 9000
    masks2 = jax.block_until_ready(sampler2(batch2, seed))
    assert masks2.shape == (batch2, 8) and masks2.dtype == jnp.bool_
    i2 = np.asarray(masks2).astype(np.int64) @ (1 << np.arange(8))
    assert i2.min() >= 1 and i2.max() <= 255
    assert len(np.unique(i2)) > 200

    # --- size_eff > 16 path (two hash streams), multi-dim shape ---------------
    sampler3, _, k3 = make_uniform_mask(18, None)
    masks3 = jax.block_until_ready(sampler3((4, 50), seed))
    assert masks3.shape == (4, 50, 18) and masks3.dtype == jnp.bool_
    i3 = np.asarray(masks3).reshape(-1, 18).astype(np.int64) @ (1 << np.arange(18))
    assert i3.min() >= 1 and i3.max() <= (1 << 18) - 1

    print("KERNEL_OK")
</pallas_src>

<mosaic_0001>
module attributes {stable_mosaic.version = 11 : i64} {
  func.func @_uniform_mask_kernel(%arg0: i32, %arg1: memref<1xi32, #tpu.memory_space<smem>>, %arg2: memref<1x8x32x128xi8, #tpu.memory_space<vmem>>) attributes {dimension_semantics = [#tpu.dimension_semantics<parallel>], iteration_bounds = array<i64: 1>, scalar_prefetch = 1 : i64, scratch_operands = 0 : i64, tpu.core_type = #tpu.core_type<tc>, window_params = [{transform_indices = @transform_0, window_bounds = array<i64: 1, 8, 32, 128>}]} {
    %0 = tpu.iota {dimensions = array<i32: 0>} : vector<32x128xi32>
    %1 = tpu.iota {dimensions = array<i32: 1>} : vector<32x128xi32>
    %c4096_i32 = arith.constant 4096 : i32
    %2 = arith.muli %arg0, %c4096_i32 : i32
    %c128_i32 = arith.constant 128 : i32
    %3 = vector.broadcast %c128_i32 : i32 to vector<32x128xi32>
    %4 = arith.muli %0, %3 : vector<32x128xi32>
    %5 = vector.broadcast %2 : i32 to vector<32x128xi32>
    %6 = arith.addi %5, %4 : vector<32x128xi32>
    %7 = arith.addi %6, %1 : vector<32x128xi32>
    %c0 = arith.constant 0 : index
    %8 = memref.load %arg1[%c0] : memref<1xi32, #tpu.memory_space<smem>>
    %c-1640531527_i32 = arith.constant -1640531527 : i32
    %9 = arith.muli %8, %c-1640531527_i32 : i32
    %c1_i32 = arith.constant 1 : i32
    %10 = arith.addi %9, %c1_i32 : i32
    %11 = vector.broadcast %10 : i32 to vector<32x128xi32>
    %12 = arith.xori %7, %11 : vector<32x128xi32>
    %c16_i32 = arith.constant 16 : i32
    %13 = vector.broadcast %c16_i32 : i32 to vector<32x128xi32>
    %14 = arith.shrsi %12, %13 : vector<32x128xi32>
    %c65535_i32 = arith.constant 65535 : i32
    %15 = vector.broadcast %c65535_i32 : i32 to vector<32x128xi32>
    %16 = arith.andi %14, %15 : vector<32x128xi32>
    %17 = arith.xori %12, %16 : vector<32x128xi32>
    %c2146121005_i32 = arith.constant 2146121005 : i32
    %18 = vector.broadcast %c2146121005_i32 : i32 to vector<32x128xi32>
    %19 = arith.muli %17, %18 : vector<32x128xi32>
    %c15_i32 = arith.constant 15 : i32
    %20 = vector.broadcast %c15_i32 : i32 to vector<32x128xi32>
    %21 = arith.shrsi %19, %20 : vector<32x128xi32>
    %c131071_i32 = arith.constant 131071 : i32
    %22 = vector.broadcast %c131071_i32 : i32 to vector<32x128xi32>
    %23 = arith.andi %21, %22 : vector<32x128xi32>
    %24 = arith.xori %19, %23 : vector<32x128xi32>
    %c-2073254261_i32 = arith.constant -2073254261 : i32
    %25 = vector.broadcast %c-2073254261_i32 : i32 to vector<32x128xi32>
    %26 = arith.muli %24, %25 : vector<32x128xi32>
    %c16_i32_0 = arith.constant 16 : i32
    %27 = vector.broadcast %c16_i32_0 : i32 to vector<32x128xi32>
    %28 = arith.shrsi %26, %27 : vector<32x128xi32>
    %c65535_i32_1 = arith.constant 65535 : i32
    %29 = vector.broadcast %c65535_i32_1 : i32 to vector<32x128xi32>
    %30 = arith.andi %28, %29 : vector<32x128xi32>
    %31 = arith.xori %26, %30 : vector<32x128xi32>
    %c31_i32 = arith.constant 31 : i32
    %32 = vector.broadcast %c31_i32 : i32 to vector<32x128xi32>
    %33 = arith.andi %31, %32 : vector<32x128xi32>
    %c5_i32 = arith.constant 5 : i32
    %34 = vector.broadcast %c5_i32 : i32 to vector<32x128xi32>
    %35 = arith.shrsi %31, %34 : vector<32x128xi32>
    %c134217727_i32 = arith.constant 134217727 : i32
    %36 = vector.broadcast %c134217727_i32 : i32 to vector<32x128xi32>
    %37 = arith.andi %35, %36 : vector<32x128xi32>
    %c31_i32_2 = arith.constant 31 : i32
    %38 = vector.broadcast %c31_i32_2 : i32 to vector<32x128xi32>
    %39 = arith.andi %37, %38 : vector<32x128xi32>
    %c0_i32 = arith.constant 0 : i32
    %40 = vector.broadcast %c0_i32 : i32 to vector<32x128xi32>
    %41 = arith.cmpi ne, %33, %40 : vector<32x128xi32>
    %42 = arith.select %41, %33, %39 : vector<32x128xi1>, vector<32x128xi32>
    %c0_i32_3 = arith.constant 0 : i32
    %43 = vector.broadcast %c0_i32_3 : i32 to vector<32x128xi32>
    %44 = arith.cmpi ne, %42, %43 : vector<32x128xi32>
    %c1_i32_4 = arith.constant 1 : i32
    %45 = vector.broadcast %c1_i32_4 : i32 to vector<32x128xi32>
    %46 = arith.select %44, %42, %45 : vector<32x128xi1>, vector<32x128xi32>
    %c0_i8 = arith.constant 0 : i8
    %47 = vector.broadcast %c0_i8 : i8 to vector<32x128xi8>
    %c1_i32_5 = arith.constant 1 : i32
    %48 = vector.broadcast %c1_i32_5 : i32 to vector<32x128xi32>
    %49 = arith.andi %46, %48 : vector<32x128xi32>
    %c0_i32_6 = arith.constant 0 : i32
    %50 = vector.broadcast %c0_i32_6 : i32 to vector<32x128xi32>
    %51 = arith.cmpi ne, %49, %50 : vector<32x128xi32>
    %52 = arith.extui %51 : vector<32x128xi1> to vector<32x128xi8>
    %c0_7 = arith.constant 0 : index
    %c0_8 = arith.constant 0 : index
    %c0_9 = arith.constant 0 : index
    %c0_10 = arith.constant 0 : index
    %53 = vector.load %arg2[%c0_7, %c0_8, %c0_9, %c0_10] : memref<1x8x32x128xi8, #tpu.memory_space<vmem>>, vector<1x1x32x128xi8>
    %54 = vector.shape_cast %53 : vector<1x1x32x128xi8> to vector<32x128xi8>
    %55 = vector.shape_cast %52 : vector<32x128xi8> to vector<1x1x32x128xi8>
    tpu.vector_store %arg2[%c0_7, %c0_8, %c0_9, %c0_10], %55 {strides = array<i32>} : memref<1x8x32x128xi8, #tpu.memory_space<vmem>>, vector<1x1x32x128xi8>,
    %c0_11 = arith.constant 0 : index
    %c1 = arith.constant 1 : index
    %c0_12 = arith.constant 0 : index
    %c0_13 = arith.constant 0 : index
    %56 = vector.load %arg2[%c0_11, %c1, %c0_12, %c0_13] : memref<1x8x32x128xi8, #tpu.memory_space<vmem>>, vector<1x1x32x128xi8>
    %57 = vector.shape_cast %56 : vector<1x1x32x128xi8> to vector<32x128xi8>
    %58 = vector.shape_cast %47 : vector<32x128xi8> to vector<1x1x32x128xi8>
    tpu.vector_store %arg2[%c0_11, %c1, %c0_12, %c0_13], %58 {strides = array<i32>} : memref<1x8x32x128xi8, #tpu.memory_space<vmem>>, vector<1x1x32x128xi8>,
    %c2_i32 = arith.constant 2 : i32
    %59 = vector.broadcast %c2_i32 : i32 to vector<32x128xi32>
    %60 = arith.andi %46, %59 : vector<32x128xi32>
    %c0_i32_14 = arith.constant 0 : i32
    %61 = vector.broadcast %c0_i32_14 : i32 to vector<32x128xi32>
    %62 = arith.cmpi ne, %60, %61 : vector<32x128xi32>
    %63 = arith.extui %62 : vector<32x128xi1> to vector<32x128xi8>
    %c0_15 = arith.constant 0 : index
    %c2 = arith.constant 2 : index
    %c0_16 = arith.constant 0 : index
    %c0_17 = arith.constant 0 : index
    %64 = vector.load %arg2[%c0_15, %c2, %c0_16, %c0_17] : memref<1x8x32x128xi8, #tpu.memory_space<vmem>>, vector<1x1x32x128xi8>
    %65 = vector.shape_cast %64 : vector<1x1x32x128xi8> to vector<32x128xi8>
    %66 = vector.shape_cast %63 : vector<32x128xi8> to vector<1x1x32x128xi8>
    tpu.vector_store %arg2[%c0_15, %c2, %c0_16, %c0_17], %66 {strides = array<i32>} : memref<1x8x32x128xi8, #tpu.memory_space<vmem>>, vector<1x1x32x128xi8>,
    %c4_i32 = arith.constant 4 : i32
    %67 = vector.broadcast %c4_i32 : i32 to vector<32x128xi32>
    %68 = arith.andi %46, %67 : vector<32x128xi32>
    %c0_i32_18 = arith.constant 0 : i32
    %69 = vector.broadcast %c0_i32_18 : i32 to vector<32x128xi32>
    %70 = arith.cmpi ne, %68, %69 : vector<32x128xi32>
    %71 = arith.extui %70 : vector<32x128xi1> to vector<32x128xi8>
    %c0_19 = arith.constant 0 : index
    %c3 = arith.constant 3 : index
    %c0_20 = arith.constant 0 : index
    %c0_21 = arith.constant 0 : index
    %72 = vector.load %arg2[%c0_19, %c3, %c0_20, %c0_21] : memref<1x8x32x128xi8, #tpu.memory_space<vmem>>, vector<1x1x32x128xi8>
    %73 = vector.shape_cast %72 : vector<1x1x32x128xi8> to vector<32x128xi8>
    %74 = vector.shape_cast %71 : vector<32x128xi8> to vector<1x1x32x128xi8>
    tpu.vector_store %arg2[%c0_19, %c3, %c0_20, %c0_21], %74 {strides = array<i32>} : memref<1x8x32x128xi8, #tpu.memory_space<vmem>>, vector<1x1x32x128xi8>,
    %c0_22 = arith.constant 0 : index
    %c4 = arith.constant 4 : index
    %c0_23 = arith.constant 0 : index
    %c0_24 = arith.constant 0 : index
    %75 = vector.load %arg2[%c0_22, %c4, %c0_23, %c0_24] : memref<1x8x32x128xi8, #tpu.memory_space<vmem>>, vector<1x1x32x128xi8>
    %76 = vector.shape_cast %75 : vector<1x1x32x128xi8> to vector<32x128xi8>
    %77 = vector.shape_cast %47 : vector<32x128xi8> to vector<1x1x32x128xi8>
    tpu.vector_store %arg2[%c0_22, %c4, %c0_23, %c0_24], %77 {strides = array<i32>} : memref<1x8x32x128xi8, #tpu.memory_space<vmem>>, vector<1x1x32x128xi8>,
    %c8_i32 = arith.constant 8 : i32
    %78 = vector.broadcast %c8_i32 : i32 to vector<32x128xi32>
    %79 = arith.andi %46, %78 : vector<32x128xi32>
    %c0_i32_25 = arith.constant 0 : i32
    %80 = vector.broadcast %c0_i32_25 : i32 to vector<32x128xi32>
    %81 = arith.cmpi ne, %79, %80 : vector<32x128xi32>
    %82 = arith.extui %81 : vector<32x128xi1> to vector<32x128xi8>
    %c0_26 = arith.constant 0 : index
    %c5 = arith.constant 5 : index
    %c0_27 = arith.constant 0 : index
    %c0_28 = arith.constant 0 : index
    %83 = vector.load %arg2[%c0_26, %c5, %c0_27, %c0_28] : memref<1x8x32x128xi8, #tpu.memory_space<vmem>>, vector<1x1x32x128xi8>
    %84 = vector.shape_cast %83 : vector<1x1x32x128xi8> to vector<32x128xi8>
    %85 = vector.shape_cast %82 : vector<32x128xi8> to vector<1x1x32x128xi8>
    tpu.vector_store %arg2[%c0_26, %c5, %c0_27, %c0_28], %85 {strides = array<i32>} : memref<1x8x32x128xi8, #tpu.memory_space<vmem>>, vector<1x1x32x128xi8>,
    %c0_29 = arith.constant 0 : index
    %c6 = arith.constant 6 : index
    %c0_30 = arith.constant 0 : index
    %c0_31 = arith.constant 0 : index
    %86 = vector.load %arg2[%c0_29, %c6, %c0_30, %c0_31] : memref<1x8x32x128xi8, #tpu.memory_space<vmem>>, vector<1x1x32x128xi8>
    %87 = vector.shape_cast %86 : vector<1x1x32x128xi8> to vector<32x128xi8>
    %88 = vector.shape_cast %47 : vector<32x128xi8> to vector<1x1x32x128xi8>
    tpu.vector_store %arg2[%c0_29, %c6, %c0_30, %c0_31], %88 {strides = array<i32>} : memref<1x8x32x128xi8, #tpu.memory_space<vmem>>, vector<1x1x32x128xi8>,
    %c16_i32_32 = arith.constant 16 : i32
    %89 = vector.broadcast %c16_i32_32 : i32 to vector<32x128xi32>
    %90 = arith.andi %46, %89 : vector<32x128xi32>
    %c0_i32_33 = arith.constant 0 : i32
    %91 = vector.broadcast %c0_i32_33 : i32 to vector<32x128xi32>
    %92 = arith.cmpi ne, %90, %91 : vector<32x128xi32>
    %93 = arith.extui %92 : vector<32x128xi1> to vector<32x128xi8>
    %c0_34 = arith.constant 0 : index
    %c7 = arith.constant 7 : index
    %c0_35 = arith.constant 0 : index
    %c0_36 = arith.constant 0 : index
    %94 = vector.load %arg2[%c0_34, %c7, %c0_35, %c0_36] : memref<1x8x32x128xi8, #tpu.memory_space<vmem>>, vector<1x1x32x128xi8>
    %95 = vector.shape_cast %94 : vector<1x1x32x128xi8> to vector<32x128xi8>
    %96 = vector.shape_cast %93 : vector<32x128xi8> to vector<1x1x32x128xi8>
    tpu.vector_store %arg2[%c0_34, %c7, %c0_35, %c0_36], %96 {strides = array<i32>} : memref<1x8x32x128xi8, #tpu.memory_space<vmem>>, vector<1x1x32x128xi8>,
    return
  }
  func.func @transform_0(%arg0: i32, %arg1: memref<1xi32, #tpu.memory_space<smem>>) -> (i32, i32, i32, i32) {
    %c0_i32 = arith.constant 0 : i32
    %c0_i32_0 = arith.constant 0 : i32
    %c0_i32_1 = arith.constant 0 : i32
    %c0_i32_2 = arith.constant 0 : i32
    return %arg0, %c0_i32, %c0_i32_0, %c0_i32_1 : i32, i32, i32, i32
  }
}

</mosaic_0001>

<llo_original>
// kernel: tpu_custom_call.1
$region0: #{tpu_custom_call.1}
  #allocation0 [shape = 'u32[]', space=smem, size = 0x4, offset = 0x4, fixed_abs, tag = 'smem constant byte address 0x4 - core index']
  #allocation1 [shape = 'u32[144,128]{1,0:T(1,128)}', space=vmem, size = 0x12000, scoped, tag = 'internal scratch']
  #allocation2 [shape = 's32[1]{0}', space=sflag, size = 0x4, scoped, tag = 'scoped memory for tpu_custom_call.1']
  #allocation3 [shape = 's32[1]{0:T(128)S(6)}', space=smem, size = 0x200, scoped, tag = 'prefetched SMEM operand 0']
  %s0 = inlined_call_operand.<no memory space> [shape: s32[1], index: 0, kind: input, shape index: {}]
  %s1 = inlined_call_operand.hbm [shape: u8[1,8,32,128], index: 1, kind: output, shape index: {}]
  %s2 = sld [smem:[#allocation0]]
  $region10: #{tpu_custom_call.1} parent=0
    _
  %s4 = ssub.s32 1, %s2
  %s5 = scalar_select 0, %s4, %s2
  %6 = sst [smem:[#allocation3]] %s0
  $region1: #{tpu_custom_call.1} parent=0
    #allocation4 [shape = 'u8[32768]{0}', space=vmem, size = 0x8000, scoped, tag = 'output window, operand 0, single buffered']
    #allocation5 [shape = 's32[1]{0}', space=sflag, size = 0x4, scoped, tag = 'scoped memory for tpu_custom_call.1']
    %7 = vsyncpa [#allocation5], 0
    %v10 = vlaneseq
    %v11 = vshrl.u32 %v10, 7
    %v12 = vadd.s32 %v11, 8
    %v13 = vadd.s32 %v11, 16
    %v14 = vadd.s32 %v11, 24
    %v15 = vlaneseq
    %v16 = vand.u32 %v15, 127
    %s17 = smul.u32 0, 4096
    %v18 = vmul.u32 %v11, 128
    %v19 = vmul.u32 %v12, 128
    %v20 = vmul.u32 %v13, 128
    %v21 = vmul.u32 %v14, 128
    %v22 = vstv %s17
    %v23 = vadd.s32 %v22, %v18
    %v24 = vadd.s32 %v22, %v19
    %v25 = vadd.s32 %v22, %v20
    %v26 = vadd.s32 %v22, %v21
    %v27 = vadd.s32 %v23, %v16
    %v28 = vadd.s32 %v24, %v16
    %v29 = vadd.s32 %v25, %v16
    %v30 = vadd.s32 %v26, %v16
    %s31 = sld [smem:[#allocation3]]
    %s32 = smul.u32 %s31, 2654435769
    %s33 = sadd.s32 %s32, 1
    %v34 = vstv %s33
    %v35 = vxor.u32 %v27, %v34
    %v36 = vxor.u32 %v28, %v34
    %v37 = vxor.u32 %v29, %v34
    %v38 = vxor.u32 %v30, %v34
    %v39 = vshra.s32 %v35, 16
    %v40 = vshra.s32 %v36, 16
    %v41 = vshra.s32 %v37, 16
    %v42 = vshra.s32 %v38, 16
    %v43 = vand.u32 %v39, 65535
    %v44 = vand.u32 %v40, 65535
    %v45 = vand.u32 %v41, 65535
    %v46 = vand.u32 %v42, 65535
    %v47 = vxor.u32 %v35, %v43
    %v48 = vxor.u32 %v36, %v44
    %v49 = vxor.u32 %v37, %v45
    %v50 = vxor.u32 %v38, %v46
    %v51 = vmul.u32 %v47, 2146121005
    %v52 = vmul.u32 %v48, 2146121005
    %v53 = vmul.u32 %v49, 2146121005
    %v54 = vmul.u32 %v50, 2146121005
    %v55 = vshra.s32 %v51, 15
    %v56 = vshra.s32 %v52, 15
    %v57 = vshra.s32 %v53, 15
    %v58 = vshra.s32 %v54, 15
    %v59 = vand.u32 %v55, 131071
    %v60 = vand.u32 %v56, 131071
    %v61 = vand.u32 %v57, 131071
    %v62 = vand.u32 %v58, 131071
    %v63 = vxor.u32 %v51, %v59
    %v64 = vxor.u32 %v52, %v60
    %v65 = vxor.u32 %v53, %v61
    %v66 = vxor.u32 %v54, %v62
    %v67 = vmul.u32 %v63, 2221713035
    %v68 = vmul.u32 %v64, 2221713035
    %v69 = vmul.u32 %v65, 2221713035
    %v70 = vmul.u32 %v66, 2221713035
    %v71 = vshra.s32 %v67, 16
    %v72 = vshra.s32 %v68, 16
    %v73 = vshra.s32 %v69, 16
    %v74 = vshra.s32 %v70, 16
    %v75 = vand.u32 %v71, 65535
    %v76 = vand.u32 %v72, 65535
    %v77 = vand.u32 %v73, 65535
    %v78 = vand.u32 %v74, 65535
    %v79 = vxor.u32 %v67, %v75
    %v80 = vxor.u32 %v68, %v76
    %v81 = vxor.u32 %v69, %v77
    %v82 = vxor.u32 %v70, %v78
    %v83 = vand.u32 %v79, 31
    %v84 = vand.u32 %v80, 31
    %v85 = vand.u32 %v81, 31
    %v86 = vand.u32 %v82, 31
    %v87 = vshra.s32 %v79, 5
    %v88 = vshra.s32 %v80, 5
    %v89 = vshra.s32 %v81, 5
    %v90 = vshra.s32 %v82, 5
    %v91 = vand.u32 %v87, 134217727
    %v92 = vand.u32 %v88, 134217727
    %v93 = vand.u32 %v89, 134217727
    %v94 = vand.u32 %v90, 134217727
    %v95 = vand.u32 %v91, 31
    %v96 = vand.u32 %v92, 31
    %v97 = vand.u32 %v93, 31
    %v98 = vand.u32 %v94, 31
    %vm99 = vcmp.ne.s32.totalorder %v83, 0
    %vm100 = vcmp.ne.s32.totalorder %v84, 0
    %vm101 = vcmp.ne.s32.totalorder %v85, 0
    %vm102 = vcmp.ne.s32.totalorder %v86, 0
    %v103 = vsel %vm99, %v83, %v95
    %v104 = vsel %vm100, %v84, %v96
    %v105 = vsel %vm101, %v85, %v97
    %v106 = vsel %vm102, %v86, %v98
    %vm107 = vcmp.ne.s32.totalorder %v103, 0
    %vm108 = vcmp.ne.s32.totalorder %v104, 0
    %vm109 = vcmp.ne.s32.totalorder %v105, 0
    %vm110 = vcmp.ne.s32.totalorder %v106, 0
    %v111 = vsel %vm107, %v103, 1
    %v112 = vsel %vm108, %v104, 1
    %v113 = vsel %vm109, %v105, 1
    %v114 = vsel %vm110, %v106, 1
    %v115 = vand.u32 %v111, 1
    %v116 = vand.u32 %v112, 1
    %v117 = vand.u32 %v113, 1
    %v118 = vand.u32 %v114, 1
    %vm119 = vcmp.ne.s32.totalorder %v115, 0
    %vm120 = vcmp.ne.s32.totalorder %v116, 0
    %vm121 = vcmp.ne.s32.totalorder %v117, 0
    %vm122 = vcmp.ne.s32.totalorder %v118, 0
    %vm123 = vmpackc.low %vm120, %vm119
    %vm124 = vmpackc.low %vm122, %vm121
    %vm125 = vmpackc.even %vm124, %vm123
    %v126 = vsel %vm125, 16843009, 0
    %127 = vst [vmem:[#allocation4] sm:$0xff] %v126
    %s128 = scalar_lea.vmem [#allocation4], 8
    %129 = vst [vmem:[%s128] sm:$0xff] 0
    %v130 = vand.u32 %v111, 2
    %v131 = vand.u32 %v112, 2
    %v132 = vand.u32 %v113, 2
    %v133 = vand.u32 %v114, 2
    %vm134 = vcmp.ne.s32.totalorder %v130, 0
    %vm135 = vcmp.ne.s32.totalorder %v131, 0
    %vm136 = vcmp.ne.s32.totalorder %v132, 0
    %vm137 = vcmp.ne.s32.totalorder %v133, 0
    %vm138 = vmpackc.low %vm135, %vm134
    %vm139 = vmpackc.low %vm137, %vm136
    %vm140 = vmpackc.even %vm139, %vm138
    %v141 = vsel %vm140, 16843009, 0
    %s142 = scalar_lea.vmem [#allocation4], 16
    %143 = vst [vmem:[%s142] sm:$0xff] %v141
    %v144 = vand.u32 %v111, 4
    %v145 = vand.u32 %v112, 4
    %v146 = vand.u32 %v113, 4
    %v147 = vand.u32 %v114, 4
    %vm148 = vcmp.ne.s32.totalorder %v144, 0
    %vm149 = vcmp.ne.s32.totalorder %v145, 0
    %vm150 = vcmp.ne.s32.totalorder %v146, 0
    %vm151 = vcmp.ne.s32.totalorder %v147, 0
    %vm152 = vmpackc.low %vm149, %vm148
    %vm153 = vmpackc.low %vm151, %vm150
    %vm154 = vmpackc.even %vm153, %vm152
    %v155 = vsel %vm154, 16843009, 0
    %s156 = scalar_lea.vmem [#allocation4], 24
    %157 = vst [vmem:[%s156] sm:$0xff] %v155
    %s158 = scalar_lea.vmem [#allocation4], 32
    %159 = vst [vmem:[%s158] sm:$0xff] 0
    %v160 = vand.u32 %v111, 8
    %v161 = vand.u32 %v112, 8
    %v162 = vand.u32 %v113, 8
    %v163 = vand.u32 %v114, 8
    %vm164 = vcmp.ne.s32.totalorder %v160, 0
    %vm165 = vcmp.ne.s32.totalorder %v161, 0
    %vm166 = vcmp.ne.s32.totalorder %v162, 0
    %vm167 = vcmp.ne.s32.totalorder %v163, 0
    %vm168 = vmpackc.low %vm165, %vm164
    %vm169 = vmpackc.low %vm167, %vm166
    %vm170 = vmpackc.even %vm169, %vm168
    %v171 = vsel %vm170, 16843009, 0
    %s172 = scalar_lea.vmem [#allocation4], 40
    %173 = vst [vmem:[%s172] sm:$0xff] %v171
    %s174 = scalar_lea.vmem [#allocation4], 48
    %175 = vst [vmem:[%s174] sm:$0xff] 0
    %v176 = vand.u32 %v111, 16
    %v177 = vand.u32 %v112, 16
    %v178 = vand.u32 %v113, 16
    %v179 = vand.u32 %v114, 16
    %vm180 = vcmp.ne.s32.totalorder %v176, 0
    %vm181 = vcmp.ne.s32.totalorder %v177, 0
    %vm182 = vcmp.ne.s32.totalorder %v178, 0
    %vm183 = vcmp.ne.s32.totalorder %v179, 0
    %vm184 = vmpackc.low %vm181, %vm180
    %vm185 = vmpackc.low %vm183, %vm182
    %vm186 = vmpackc.even %vm185, %vm184
    %v187 = vsel %vm186, 16843009, 0
    %s188 = scalar_lea.vmem [#allocation4], 56
    %189 = vst [vmem:[%s188] sm:$0xff] %v187
    // Predicated region
    $region2: #{tpu_custom_call.1} parent=1 // pred_check
      _
    $region3: #{tpu_custom_call.1} parent=1 // pred_check_branch
      %191 = sbr.rel (0) target = $region5
    $region4: #{tpu_custom_call.1} parent=1 // pred_region
      %s193 = ssub.s32 1024, 1024
      %194 = vsyncadd [#allocation5], %s193
      %s195 = sshll.u32 [#allocation4], 4
      %s196 = int_to_ptr.vmem [resolvable:$true] %s195
      %201 = dma.vmem_to_hbm [thread:$0]  %s196, 1024, %s1, [#allocation5], 128, 128, 8
    $region5: #{tpu_custom_call.1} parent=1 // pred_fallthru
      _
    // Predicated region
    $region6: #{tpu_custom_call.1} parent=1 // pred_check
      _
    $region7: #{tpu_custom_call.1} parent=1 // pred_check_branch
      %203 = sbr.rel (0) target = $region9
    $region8: #{tpu_custom_call.1} parent=1 // pred_region
      %204 = dma.done [#allocation5], 1024
    $region9: #{tpu_custom_call.1} parent=1 // pred_fallthru
      _
    %205 = vsyncpa [#allocation5], 1

</llo_original>
